<compile_context>
chip_gen: v6e
topology: v6e:2x2x1
jax: 0.10.0
libtpu: 0.0.40
codegen_flags: <defaults>
</compile_context>

<pallas_src>
import jax
import jax.numpy as jnp
from jax.experimental import pallas as pl
from jax.experimental.pallas import tpu as pltpu

EPS = 1e-5                  # torch.nn.LayerNorm default eps
D_IN, D1, D2 = 4, 10, 20    # l1: 4->10, l2: 10->20, l3: 20->d3


def _round_up(x, m):
    return (x + m - 1) // m * m


def make_kernel(d3, lane_pad):
    """Fused MLP kernel: 3x (Linear -> LayerNorm -> PReLU), batch == 1."""
    # Single-slab row layout (every section start is a multiple of 8 sublanes):
    W1_OFF = 0                    # rows [0, 8):   W1^T  (4 real rows, in -> out)
    V_OFF = 8                     # rows [8, 24):  b1,g1,be1,b2,g2,be2,b3,g3,be3 (9 rows)
    W2_OFF = 24                   # rows [24, 24+lane_pad):            W2^T padded square
    W3_OFF = 24 + lane_pad        # rows [24+lane_pad, 24+2*lane_pad): W3^T padded square
    v_rows = (V_OFF, V_OFF + 3, V_OFF + 6)

    def kernel(a_ref, p_ref, w_ref, o_ref):
        slope = p_ref[0, 0]       # shared PReLU slope, scalar read from SMEM

        def ln_prelu(y, d_out, vr):
            # Full-lane-width, unmasked LayerNorm: padded lanes of y are exactly 0
            # (W columns, bias all zero-padded), so sums over lane_pad divided by the
            # compile-time d_out equal the statistics over the real features.
            inv_d = 1.0 / float(d_out)
            s = jnp.sum(y, axis=-1, keepdims=True)
            ss = jnp.sum(y * y, axis=-1, keepdims=True)      # co-issues with `s`
            mu = s * inv_d
            var = jnp.maximum(ss * inv_d - mu * mu, 0.0)     # biased var (torch LN)
            yn = (y - mu) * jax.lax.rsqrt(var + EPS)
            # gamma/beta are zero in padded lanes -> padded lanes collapse back to 0,
            # and PReLU(0) == 0, so the next layer's matmul input stays clean.
            z = yn * w_ref[pl.ds(vr + 1, 1), :] + w_ref[pl.ds(vr + 2, 1), :]
            return jnp.where(z >= 0.0, z, slope * z)         # PReLU (shared slope)

        # ---- layer 1 (K = 4): VPU scalar-splat MACs, tree-structured -------------
        t0 = (a_ref[0, 0] * w_ref[pl.ds(W1_OFF + 0, 1), :]
              + a_ref[0, 1] * w_ref[pl.ds(W1_OFF + 1, 1), :])
        t1 = (a_ref[0, 2] * w_ref[pl.ds(W1_OFF + 2, 1), :]
              + a_ref[0, 3] * w_ref[pl.ds(W1_OFF + 3, 1), :])
        y = ln_prelu(t0 + t1 + w_ref[pl.ds(v_rows[0], 1), :], D1, v_rows[0])

        # ---- layer 2 (K = 10): one MXU gemv ---------------------------------------
        y = jnp.dot(y, w_ref[pl.ds(W2_OFF, lane_pad), :],
                    preferred_element_type=jnp.float32)
        y = ln_prelu(y + w_ref[pl.ds(v_rows[1], 1), :], D2, v_rows[1])

        # ---- layer 3 (K = 20): one MXU gemv ---------------------------------------
        y = jnp.dot(y, w_ref[pl.ds(W3_OFF, lane_pad), :],
                    preferred_element_type=jnp.float32)
        y = ln_prelu(y + w_ref[pl.ds(v_rows[2], 1), :], d3, v_rows[2])

        o_ref[...] = y                       # lane-dense (1, lane_pad) store

    return kernel


def pack_params(params):
    """One-time packing: 12 tiny tensors -> ONE lane-padded f32 slab (+ 1 SMEM scalar)."""
    (w1, b1, g1, be1, w2, b2, g2, be2, w3, b3, g3, be3, prelu_a) = params
    d3 = w3.shape[1]
    lane_pad = _round_up(max(D1, D2, d3), 128)
    n_rows = 24 + 2 * lane_pad

    slab = jnp.zeros((n_rows, lane_pad), jnp.float32)
    # W1^T rows (scalar-splat path only reads the first D_IN rows)
    slab = slab.at[0:D_IN, :D1].set(w1)
    # bias / gamma / beta rows
    for i, v in enumerate((b1, g1, be1, b2, g2, be2, b3, g3, be3)):
        slab = slab.at[8 + i, :v.shape[1]].set(v[0])
    # zero-padded square weight blocks for the two MXU gemvs
    slab = slab.at[24:24 + D1, :D2].set(w2)
    slab = slab.at[24 + lane_pad:24 + lane_pad + D2, :d3].set(w3)
    return (slab, prelu_a, d3, lane_pad)


def neqc_nn_forward(alpha, packed):
    """'neqc_express' forward: 3x (Linear -> LayerNorm -> PReLU), then flatten."""
    slab, prelu_a, d3, lane_pad = packed
    assert alpha.shape == (1, D_IN), "module semantics: batch == 1, 4 input features"

    y = pl.pallas_call(
        make_kernel(d3, lane_pad),
        out_shape=jax.ShapeDtypeStruct((1, lane_pad), jnp.float32),
        in_specs=[
            pl.BlockSpec(memory_space=pltpu.MemorySpace.SMEM),   # alpha scalars
            pl.BlockSpec(memory_space=pltpu.MemorySpace.SMEM),   # PReLU slope (scalar)
            pl.BlockSpec(memory_space=pltpu.MemorySpace.VMEM),   # fused parameter slab
        ],
        out_specs=pl.BlockSpec(memory_space=pltpu.MemorySpace.VMEM),
    )(alpha, prelu_a, slab)

    # matches the module's `y.reshape(3*num_qubits + 4*num_blocks)` (batch == 1)
    return y[0, :d3]


def init_params(key, num_qubits, num_blocks):
    """Deterministic synthetic init mirroring the module's parameter shapes."""
    d3 = 3 * num_qubits + 4 * num_blocks
    ks = jax.random.split(key, 3)

    def lin(k, fan_in, fan_out):
        kw, kb = jax.random.split(k)
        bound = 1.0 / jnp.sqrt(fan_in)
        # stored already transposed: (in, out)
        w = jax.random.uniform(kw, (fan_in, fan_out), jnp.float32, -bound, bound)
        b = jax.random.uniform(kb, (1, fan_out), jnp.float32, -bound, bound)
        return w, b

    w1, b1 = lin(ks[0], D_IN, D1)
    w2, b2 = lin(ks[1], D1, D2)
    w3, b3 = lin(ks[2], D2, d3)
    # LayerNorm affine params (gamma=1, beta=0, torch default init)
    g1, be1 = jnp.ones((1, D1), jnp.float32), jnp.zeros((1, D1), jnp.float32)
    g2, be2 = jnp.ones((1, D2), jnp.float32), jnp.zeros((1, D2), jnp.float32)
    g3, be3 = jnp.ones((1, d3), jnp.float32), jnp.zeros((1, d3), jnp.float32)
    # PReLU single shared slope, torch default 0.25
    prelu_a = jnp.full((1, 1), 0.25, jnp.float32)
    return (w1, b1, g1, be1, w2, b2, g2, be2, w3, b3, g3, be3, prelu_a)


def reference_forward(alpha, params):
    """Pure-JAX reference for correctness checking."""
    (w1, b1, g1, be1, w2, b2, g2, be2, w3, b3, g3, be3, prelu_a) = params

    def block(x, w, b, g, be):
        y = x @ w + b
        mu = jnp.mean(y, axis=-1, keepdims=True)
        var = jnp.mean((y - mu) ** 2, axis=-1, keepdims=True)
        y = (y - mu) / jnp.sqrt(var + EPS)
        y = y * g + be
        return jnp.where(y >= 0, y, prelu_a * y)

    y = block(alpha, w1, b1, g1, be1)
    y = block(y, w2, b2, g2, be2)
    y = block(y, w3, b3, g3, be3)
    return y.reshape(-1)


if __name__ == "__main__":
    num_qubits, num_blocks = 4, 2          # out_dim = 3*4 + 4*2 = 20
    key = jax.random.PRNGKey(0)
    k_param, k_alpha = jax.random.split(key)

    params = init_params(k_param, num_qubits, num_blocks)
    packed = pack_params(params)

    # module input `alpha` (and its self.alpha parameter) is (1, 4), uniform [0, 2*pi)
    alpha = jax.random.uniform(k_alpha, (1, 4), jnp.float32, 0.0, 2.0 * jnp.pi)

    out = neqc_nn_forward(alpha, packed)
    out = jax.block_until_ready(out)

    ref = reference_forward(alpha, params)
    out_dim = 3 * num_qubits + 4 * num_blocks
    assert out.shape == (out_dim,)
    # single-pass E[y^2]-E[y]^2 variance + MXU accumulation order differ slightly from
    # the two-pass reference; 1e-4 still catches any structural error.
    assert jnp.allclose(out, ref, atol=1e-4, rtol=1e-4), "mismatch vs reference"

    print("KERNEL_OK")
</pallas_src>

<mosaic_0001>
module attributes {stable_mosaic.version = 11 : i64} {
  func.func @kernel(%arg0: memref<1x4xf32, #tpu.memory_space<smem>>, %arg1: memref<1x1xf32, #tpu.memory_space<smem>>, %arg2: memref<280x128xf32, #tpu.memory_space<vmem>>, %arg3: memref<1x128xf32, #tpu.memory_space<vmem>>) attributes {dimension_semantics = [], scalar_prefetch = 0 : i64, scratch_operands = 0 : i64, tpu.core_type = #tpu.core_type<tc>} {
    %c0 = arith.constant 0 : index
    %c0_0 = arith.constant 0 : index
    %0 = memref.load %arg1[%c0, %c0_0] : memref<1x1xf32, #tpu.memory_space<smem>>
    %c0_1 = arith.constant 0 : index
    %c0_2 = arith.constant 0 : index
    %1 = memref.load %arg0[%c0_1, %c0_2] : memref<1x4xf32, #tpu.memory_space<smem>>
    %c0_3 = arith.constant 0 : index
    %c0_4 = arith.constant 0 : index
    %2 = vector.load %arg2[%c0_3, %c0_4] : memref<280x128xf32, #tpu.memory_space<vmem>>, vector<1x128xf32>
    %3 = vector.broadcast %1 : f32 to vector<1x128xf32>
    %4 = arith.mulf %3, %2 : vector<1x128xf32>
    %c0_5 = arith.constant 0 : index
    %c1 = arith.constant 1 : index
    %5 = memref.load %arg0[%c0_5, %c1] : memref<1x4xf32, #tpu.memory_space<smem>>
    %c1_6 = arith.constant 1 : index
    %c0_7 = arith.constant 0 : index
    %6 = vector.load %arg2[%c1_6, %c0_7] : memref<280x128xf32, #tpu.memory_space<vmem>>, vector<1x128xf32>
    %7 = vector.broadcast %5 : f32 to vector<1x128xf32>
    %8 = arith.mulf %7, %6 : vector<1x128xf32>
    %9 = arith.addf %4, %8 : vector<1x128xf32>
    %c0_8 = arith.constant 0 : index
    %c2 = arith.constant 2 : index
    %10 = memref.load %arg0[%c0_8, %c2] : memref<1x4xf32, #tpu.memory_space<smem>>
    %c2_9 = arith.constant 2 : index
    %c0_10 = arith.constant 0 : index
    %11 = vector.load %arg2[%c2_9, %c0_10] : memref<280x128xf32, #tpu.memory_space<vmem>>, vector<1x128xf32>
    %12 = vector.broadcast %10 : f32 to vector<1x128xf32>
    %13 = arith.mulf %12, %11 : vector<1x128xf32>
    %c0_11 = arith.constant 0 : index
    %c3 = arith.constant 3 : index
    %14 = memref.load %arg0[%c0_11, %c3] : memref<1x4xf32, #tpu.memory_space<smem>>
    %c3_12 = arith.constant 3 : index
    %c0_13 = arith.constant 0 : index
    %15 = vector.load %arg2[%c3_12, %c0_13] : memref<280x128xf32, #tpu.memory_space<vmem>>, vector<1x128xf32>
    %16 = vector.broadcast %14 : f32 to vector<1x128xf32>
    %17 = arith.mulf %16, %15 : vector<1x128xf32>
    %18 = arith.addf %13, %17 : vector<1x128xf32>
    %19 = arith.addf %9, %18 : vector<1x128xf32>
    %c8 = arith.constant 8 : index
    %c0_14 = arith.constant 0 : index
    %20 = vector.load %arg2[%c8, %c0_14] : memref<280x128xf32, #tpu.memory_space<vmem>>, vector<1x128xf32>
    %21 = arith.addf %19, %20 : vector<1x128xf32>
    %cst = arith.constant dense<0.000000e+00> : vector<1xf32>
    %22 = vector.multi_reduction <add>, %21, %cst [1] : vector<1x128xf32> to vector<1xf32>
    %23 = vector.shape_cast %22 : vector<1xf32> to vector<1x1xf32>
    %24 = arith.mulf %21, %21 : vector<1x128xf32>
    %cst_15 = arith.constant dense<0.000000e+00> : vector<1xf32>
    %25 = vector.multi_reduction <add>, %24, %cst_15 [1] : vector<1x128xf32> to vector<1xf32>
    %26 = vector.shape_cast %25 : vector<1xf32> to vector<1x1xf32>
    %cst_16 = arith.constant 1.000000e-01 : f32
    %27 = vector.broadcast %cst_16 : f32 to vector<1x1xf32>
    %28 = arith.mulf %23, %27 : vector<1x1xf32>
    %cst_17 = arith.constant 1.000000e-01 : f32
    %29 = vector.broadcast %cst_17 : f32 to vector<1x1xf32>
    %30 = arith.mulf %26, %29 : vector<1x1xf32>
    %31 = arith.mulf %28, %28 : vector<1x1xf32>
    %32 = arith.subf %30, %31 : vector<1x1xf32>
    %cst_18 = arith.constant 0.000000e+00 : f32
    %33 = vector.broadcast %cst_18 : f32 to vector<1x1xf32>
    %34 = arith.maximumf %32, %33 : vector<1x1xf32>
    %35 = vector.broadcast %28 : vector<1x1xf32> to vector<1x128xf32>
    %36 = arith.subf %21, %35 : vector<1x128xf32>
    %cst_19 = arith.constant 9.99999974E-6 : f32
    %37 = vector.broadcast %cst_19 : f32 to vector<1x1xf32>
    %38 = arith.addf %34, %37 : vector<1x1xf32>
    %39 = math.rsqrt %38 : vector<1x1xf32>
    %40 = vector.broadcast %39 : vector<1x1xf32> to vector<1x128xf32>
    %41 = arith.mulf %36, %40 : vector<1x128xf32>
    %c9 = arith.constant 9 : index
    %c0_20 = arith.constant 0 : index
    %42 = vector.load %arg2[%c9, %c0_20] : memref<280x128xf32, #tpu.memory_space<vmem>>, vector<1x128xf32>
    %43 = arith.mulf %41, %42 : vector<1x128xf32>
    %c10 = arith.constant 10 : index
    %c0_21 = arith.constant 0 : index
    %44 = vector.load %arg2[%c10, %c0_21] : memref<280x128xf32, #tpu.memory_space<vmem>>, vector<1x128xf32>
    %45 = arith.addf %43, %44 : vector<1x128xf32>
    %cst_22 = arith.constant 0.000000e+00 : f32
    %46 = vector.broadcast %cst_22 : f32 to vector<1x128xf32>
    %47 = arith.cmpf oge, %45, %46 : vector<1x128xf32>
    %48 = vector.broadcast %0 : f32 to vector<1x128xf32>
    %49 = arith.mulf %48, %45 : vector<1x128xf32>
    %50 = arith.select %47, %45, %49 : vector<1x128xi1>, vector<1x128xf32>
    %c24 = arith.constant 24 : index
    %c0_23 = arith.constant 0 : index
    %51 = vector.load %arg2[%c24, %c0_23] : memref<280x128xf32, #tpu.memory_space<vmem>>, vector<128x128xf32>
    %cst_24 = arith.constant dense<0.000000e+00> : vector<1x128xf32>
    %52 = tpu.matmul %50, %51, %cst_24 {dimension_numbers = #tpu.dot_dimension_numbers<[1], [0], [0], [1], [0, 0, 1, 1], [], []>} : vector<1x128xf32>, vector<128x128xf32>, vector<1x128xf32> -> vector<1x128xf32>
    %c11 = arith.constant 11 : index
    %c0_25 = arith.constant 0 : index
    %53 = vector.load %arg2[%c11, %c0_25] : memref<280x128xf32, #tpu.memory_space<vmem>>, vector<1x128xf32>
    %54 = arith.addf %52, %53 : vector<1x128xf32>
    %cst_26 = arith.constant dense<0.000000e+00> : vector<1xf32>
    %55 = vector.multi_reduction <add>, %54, %cst_26 [1] : vector<1x128xf32> to vector<1xf32>
    %56 = vector.shape_cast %55 : vector<1xf32> to vector<1x1xf32>
    %57 = arith.mulf %54, %54 : vector<1x128xf32>
    %cst_27 = arith.constant dense<0.000000e+00> : vector<1xf32>
    %58 = vector.multi_reduction <add>, %57, %cst_27 [1] : vector<1x128xf32> to vector<1xf32>
    %59 = vector.shape_cast %58 : vector<1xf32> to vector<1x1xf32>
    %cst_28 = arith.constant 5.000000e-02 : f32
    %60 = vector.broadcast %cst_28 : f32 to vector<1x1xf32>
    %61 = arith.mulf %56, %60 : vector<1x1xf32>
    %cst_29 = arith.constant 5.000000e-02 : f32
    %62 = vector.broadcast %cst_29 : f32 to vector<1x1xf32>
    %63 = arith.mulf %59, %62 : vector<1x1xf32>
    %64 = arith.mulf %61, %61 : vector<1x1xf32>
    %65 = arith.subf %63, %64 : vector<1x1xf32>
    %cst_30 = arith.constant 0.000000e+00 : f32
    %66 = vector.broadcast %cst_30 : f32 to vector<1x1xf32>
    %67 = arith.maximumf %65, %66 : vector<1x1xf32>
    %68 = vector.broadcast %61 : vector<1x1xf32> to vector<1x128xf32>
    %69 = arith.subf %54, %68 : vector<1x128xf32>
    %cst_31 = arith.constant 9.99999974E-6 : f32
    %70 = vector.broadcast %cst_31 : f32 to vector<1x1xf32>
    %71 = arith.addf %67, %70 : vector<1x1xf32>
    %72 = math.rsqrt %71 : vector<1x1xf32>
    %73 = vector.broadcast %72 : vector<1x1xf32> to vector<1x128xf32>
    %74 = arith.mulf %69, %73 : vector<1x128xf32>
    %c12 = arith.constant 12 : index
    %c0_32 = arith.constant 0 : index
    %75 = vector.load %arg2[%c12, %c0_32] : memref<280x128xf32, #tpu.memory_space<vmem>>, vector<1x128xf32>
    %76 = arith.mulf %74, %75 : vector<1x128xf32>
    %c13 = arith.constant 13 : index
    %c0_33 = arith.constant 0 : index
    %77 = vector.load %arg2[%c13, %c0_33] : memref<280x128xf32, #tpu.memory_space<vmem>>, vector<1x128xf32>
    %78 = arith.addf %76, %77 : vector<1x128xf32>
    %cst_34 = arith.constant 0.000000e+00 : f32
    %79 = vector.broadcast %cst_34 : f32 to vector<1x128xf32>
    %80 = arith.cmpf oge, %78, %79 : vector<1x128xf32>
    %81 = vector.broadcast %0 : f32 to vector<1x128xf32>
    %82 = arith.mulf %81, %78 : vector<1x128xf32>
    %83 = arith.select %80, %78, %82 : vector<1x128xi1>, vector<1x128xf32>
    %c152 = arith.constant 152 : index
    %c0_35 = arith.constant 0 : index
    %84 = vector.load %arg2[%c152, %c0_35] : memref<280x128xf32, #tpu.memory_space<vmem>>, vector<128x128xf32>
    %cst_36 = arith.constant dense<0.000000e+00> : vector<1x128xf32>
    %85 = tpu.matmul %83, %84, %cst_36 {dimension_numbers = #tpu.dot_dimension_numbers<[1], [0], [0], [1], [0, 0, 1, 1], [], []>} : vector<1x128xf32>, vector<128x128xf32>, vector<1x128xf32> -> vector<1x128xf32>
    %c14 = arith.constant 14 : index
    %c0_37 = arith.constant 0 : index
    %86 = vector.load %arg2[%c14, %c0_37] : memref<280x128xf32, #tpu.memory_space<vmem>>, vector<1x128xf32>
    %87 = arith.addf %85, %86 : vector<1x128xf32>
    %cst_38 = arith.constant dense<0.000000e+00> : vector<1xf32>
    %88 = vector.multi_reduction <add>, %87, %cst_38 [1] : vector<1x128xf32> to vector<1xf32>
    %89 = vector.shape_cast %88 : vector<1xf32> to vector<1x1xf32>
    %90 = arith.mulf %87, %87 : vector<1x128xf32>
    %cst_39 = arith.constant dense<0.000000e+00> : vector<1xf32>
    %91 = vector.multi_reduction <add>, %90, %cst_39 [1] : vector<1x128xf32> to vector<1xf32>
    %92 = vector.shape_cast %91 : vector<1xf32> to vector<1x1xf32>
    %cst_40 = arith.constant 5.000000e-02 : f32
    %93 = vector.broadcast %cst_40 : f32 to vector<1x1xf32>
    %94 = arith.mulf %89, %93 : vector<1x1xf32>
    %cst_41 = arith.constant 5.000000e-02 : f32
    %95 = vector.broadcast %cst_41 : f32 to vector<1x1xf32>
    %96 = arith.mulf %92, %95 : vector<1x1xf32>
    %97 = arith.mulf %94, %94 : vector<1x1xf32>
    %98 = arith.subf %96, %97 : vector<1x1xf32>
    %cst_42 = arith.constant 0.000000e+00 : f32
    %99 = vector.broadcast %cst_42 : f32 to vector<1x1xf32>
    %100 = arith.maximumf %98, %99 : vector<1x1xf32>
    %101 = vector.broadcast %94 : vector<1x1xf32> to vector<1x128xf32>
    %102 = arith.subf %87, %101 : vector<1x128xf32>
    %cst_43 = arith.constant 9.99999974E-6 : f32
    %103 = vector.broadcast %cst_43 : f32 to vector<1x1xf32>
    %104 = arith.addf %100, %103 : vector<1x1xf32>
    %105 = math.rsqrt %104 : vector<1x1xf32>
    %106 = vector.broadcast %105 : vector<1x1xf32> to vector<1x128xf32>
    %107 = arith.mulf %102, %106 : vector<1x128xf32>
    %c15 = arith.constant 15 : index
    %c0_44 = arith.constant 0 : index
    %108 = vector.load %arg2[%c15, %c0_44] : memref<280x128xf32, #tpu.memory_space<vmem>>, vector<1x128xf32>
    %109 = arith.mulf %107, %108 : vector<1x128xf32>
    %c16 = arith.constant 16 : index
    %c0_45 = arith.constant 0 : index
    %110 = vector.load %arg2[%c16, %c0_45] : memref<280x128xf32, #tpu.memory_space<vmem>>, vector<1x128xf32>
    %111 = arith.addf %109, %110 : vector<1x128xf32>
    %cst_46 = arith.constant 0.000000e+00 : f32
    %112 = vector.broadcast %cst_46 : f32 to vector<1x128xf32>
    %113 = arith.cmpf oge, %111, %112 : vector<1x128xf32>
    %114 = vector.broadcast %0 : f32 to vector<1x128xf32>
    %115 = arith.mulf %114, %111 : vector<1x128xf32>
    %116 = arith.select %113, %111, %115 : vector<1x128xi1>, vector<1x128xf32>
    %c0_47 = arith.constant 0 : index
    %c0_48 = arith.constant 0 : index
    %117 = vector.load %arg3[%c0_47, %c0_48] : memref<1x128xf32, #tpu.memory_space<vmem>>, vector<1x128xf32>
    tpu.vector_store %arg3[%c0_47, %c0_48], %116 {strides = array<i32>} : memref<1x128xf32, #tpu.memory_space<vmem>>, vector<1x128xf32>,
    return
  }
}

</mosaic_0001>

<llo_original>
// kernel: tpu_custom_call.1
$region0: #{tpu_custom_call.1}
  #allocation0 [shape = 'u32[]', space=smem, size = 0x4, offset = 0x4, fixed_abs, tag = 'smem constant byte address 0x4 - core index']
  #allocation1 [shape = 'u32[144,128]{1,0:T(1,128)}', space=vmem, size = 0x12000, scoped, tag = 'internal scratch']
  #allocation2 [shape = 'f32[1,1]{1,0:T(1,128)S(6)}', space=smem, size = 0x200, scoped, tag = 'scoped memory for tpu_custom_call.1']
  %s0 = inlined_call_operand.vmem [shape: f32[1,4], index: 0, kind: input, shape index: {}]
  %s1 = inlined_call_operand.<no memory space> [shape: f32[1,1], index: 1, kind: input, shape index: {}]
  %s2 = inlined_call_operand.hbm [shape: f32[280,128], index: 2, kind: input, shape index: {}]
  %s3 = inlined_call_operand.hbm [shape: f32[1,128], index: 3, kind: output, shape index: {}]
  %s4 = sld [smem:[#allocation0]]
  $region30: #{tpu_custom_call.1} parent=0
    _
  %s6 = ssub.s32 1, %s4
  %s7 = scalar_select 0, %s6, %s4
  %8 = sst [smem:[#allocation2]] %s1
  $region1: #{tpu_custom_call.1} parent=0
    #allocation3 [shape = 'u8[512]{0}', space=smem, size = 0x200, scoped, tag = 'input window, operand 0, single buffered']
    #allocation4 [shape = 's32[1]{0}', space=sflag, size = 0x4, scoped, tag = 'scoped memory for tpu_custom_call.1']
    #allocation5 [shape = 's32[1]{0}', space=sflag, size = 0x4, scoped, tag = 'scoped memory for tpu_custom_call.1']
    #allocation6 [shape = 's32[1]{0}', space=sflag, size = 0x4, scoped, tag = 'scoped memory for tpu_custom_call.1']
    #allocation7 [shape = 'u8[143360]{0}', space=vmem, size = 0x23000, scoped, tag = 'input window, operand 2, single buffered']
    #allocation8 [shape = 'u8[512]{0}', space=vmem, size = 0x400, scoped, tag = 'output window, operand 0, single buffered']
    %9 = vsyncpa [#allocation6], 0
    %10 = vsyncpa [#allocation4], 0
    %11 = vsyncpa [#allocation5], 0
    // Predicated region
    $region2: #{tpu_custom_call.1} parent=1 // pred_check
      _
    $region3: #{tpu_custom_call.1} parent=1 // pred_check_branch
      %13 = sbr.rel (0) target = $region5
    $region4: #{tpu_custom_call.1} parent=1 // pred_region
      %s15 = ssub.s32 16, 16
      %16 = vsyncadd [#allocation6], %s15
      %s18 = sshll.u32 %s0, 4
      %s19 = int_to_ptr.vmem [resolvable:$true] %s18
      %21 = dma.vmem_to_smem %s19, 16, [#allocation3], [#allocation6]
    $region5: #{tpu_custom_call.1} parent=1 // pred_fallthru
      _
    // Predicated region
    $region6: #{tpu_custom_call.1} parent=1 // pred_check
      _
    $region7: #{tpu_custom_call.1} parent=1 // pred_check_branch
      %23 = sbr.rel (0) target = $region9
    $region8: #{tpu_custom_call.1} parent=1 // pred_region
      _
    $region9: #{tpu_custom_call.1} parent=1 // pred_fallthru
      _
    // Predicated region
    $region10: #{tpu_custom_call.1} parent=1 // pred_check
      _
    $region11: #{tpu_custom_call.1} parent=1 // pred_check_branch
      %25 = sbr.rel (0) target = $region13
    $region12: #{tpu_custom_call.1} parent=1 // pred_region
      %s27 = ssub.s32 4480, 4480
      %28 = vsyncadd [#allocation4], %s27
      %s29 = sshll.u32 [#allocation7], 4
      %s30 = int_to_ptr.vmem [resolvable:$true] %s29
      %35 = dma.hbm_to_vmem [thread:$0]  %s2, 4480, %s30, [#allocation4], 128, 128, 8
    $region13: #{tpu_custom_call.1} parent=1 // pred_fallthru
      _
    // Predicated region
    $region14: #{tpu_custom_call.1} parent=1 // pred_check
      _
    $region15: #{tpu_custom_call.1} parent=1 // pred_check_branch
      %37 = sbr.rel (0) target = $region17
    $region16: #{tpu_custom_call.1} parent=1 // pred_region
      %38 = dma.done [#allocation6], 16
    $region17: #{tpu_custom_call.1} parent=1 // pred_fallthru
      _
    // Predicated region
    $region18: #{tpu_custom_call.1} parent=1 // pred_check
      _
    $region19: #{tpu_custom_call.1} parent=1 // pred_check_branch
      %40 = sbr.rel (0) target = $region21
    $region20: #{tpu_custom_call.1} parent=1 // pred_region
      %41 = dma.done [#allocation4], 4480
    $region21: #{tpu_custom_call.1} parent=1 // pred_fallthru
      _
    %42 = sfence
    %s43 = sld [smem:[#allocation2]]
    %s44 = sld [smem:[#allocation3]]
    %v45 = vld [vmem:[#allocation7] sm:$0x1]
    %v46 = vstv %s44
    %v47 = vmul.f32 %v46, %v45
    %s48 = sld [smem:[#allocation3 + $0x1]]
    %v49 = vld [vmem:[#allocation7 + $0x1] sm:$0x1]
    %v50 = vstv %s48
    %v51 = vmul.f32 %v50, %v49
    %v52 = vadd.f32 %v47, %v51
    %s53 = sld [smem:[#allocation3 + $0x2]]
    %v54 = vld [vmem:[#allocation7 + $0x2] sm:$0x1]
    %v55 = vstv %s53
    %v56 = vmul.f32 %v55, %v54
    %s57 = sld [smem:[#allocation3 + $0x3]]
    %v58 = vld [vmem:[#allocation7 + $0x3] sm:$0x1]
    %v59 = vstv %s57
    %v60 = vmul.f32 %v59, %v58
    %v61 = vadd.f32 %v56, %v60
    %v62 = vadd.f32 %v52, %v61
    %v63 = vld [vmem:[#allocation7 + $0x8] sm:$0x1]
    %v64 = vadd.f32 %v62, %v63
    %vm65 = vcmask 1040384
    %v66 = vsel %vm65, %v64, 0.0
    %67 = vadd.xlane.f32.xlu0 %v66
    %v68 = vpop.xlane.xlu0 %67
    %v69 = vmul.f32 %v64, %v64
    %v70 = vsel %vm65, %v69, 0.0
    %71 = vadd.xlane.f32.xlu0 %v70
    %v72 = vpop.xlane.xlu0 %71
    %v73 = vmul.f32 %v68, 0.1
    %v74 = vmul.f32 %v72, 0.1
    %v75 = vmul.f32 %v73, %v73
    %v76 = vsub.f32 %v74, %v75
    %v77 = vmax.f32 %v76, 0.0
    %v78 = vsub.f32 %v64, %v73
    %v79 = vadd.f32 %v77, 1e-05
    %v80 = vrsqrt.pop %v79
    %v81 = vmul.f32 %v78, %v80
    %v82 = vld [vmem:[#allocation7 + $0x9] sm:$0x1]
    %v83 = vmul.f32 %v81, %v82
    %v84 = vld [vmem:[#allocation7 + $0xa] sm:$0x1]
    %v85 = vadd.f32 %v83, %v84
    %vm86 = vcmp.ge.f32.partialorder %v85, 0.0
    %v87 = vstv %s43
    %v88 = vmul.f32 %v87, %v85
    %v89 = vsel %vm86, %v85, %v88
    %v90 = vld [vmem:[#allocation7 + $0x18] sm:$0xff]
    %v91 = vld [vmem:[#allocation7 + $0x20] sm:$0xff]
    %v92 = vld [vmem:[#allocation7 + $0x28] sm:$0xff]
    %v93 = vld [vmem:[#allocation7 + $0x30] sm:$0xff]
    %v94 = vld [vmem:[#allocation7 + $0x38] sm:$0xff]
    %v95 = vld [vmem:[#allocation7 + $0x40] sm:$0xff]
    %v96 = vld [vmem:[#allocation7 + $0x48] sm:$0xff]
    %v97 = vld [vmem:[#allocation7 + $0x50] sm:$0xff]
    %v98 = vld [vmem:[#allocation7 + $0x58] sm:$0xff]
    %v99 = vld [vmem:[#allocation7 + $0x60] sm:$0xff]
    %v100 = vld [vmem:[#allocation7 + $0x68] sm:$0xff]
    %v101 = vld [vmem:[#allocation7 + $0x70] sm:$0xff]
    %v102 = vld [vmem:[#allocation7 + $0x78] sm:$0xff]
    %v103 = vld [vmem:[#allocation7 + $0x80] sm:$0xff]
    %v104 = vld [vmem:[#allocation7 + $0x88] sm:$0xff]
    %v105 = vld [vmem:[#allocation7 + $0x90] sm:$0xff]
    %v106 = vld [vmem:[#allocation7 + $0xb] sm:$0x1]
    %107 = vmatprep.subr.mxu0 0.0
    %108 = vmatpush1.msra.mxu0 %v105
    %109 = vmatprep.subr.mxu0 0.0
    %110 = vmatpush1.msra.mxu0 %v104
    %111 = vmatprep.subr.mxu0 0.0
    %112 = vmatpush1.msra.mxu0 %v103
    %113 = vmatprep.subr.mxu0 0.0
    %114 = vmatpush1.msra.mxu0 %v102
    %115 = vmatprep.subr.mxu0 0.0
    %116 = vmatpush1.msra.mxu0 %v101
    %117 = vmatprep.subr.mxu0 0.0
    %118 = vmatpush1.msra.mxu0 %v100
    %119 = vmatprep.subr.mxu0 0.0
    %120 = vmatpush1.msra.mxu0 %v99
    %121 = vmatprep.subr.mxu0 0.0
    %122 = vmatpush1.msra.mxu0 %v98
    %123 = vmatprep.subr.mxu0 0.0
    %124 = vmatpush1.msra.mxu0 %v97
    %125 = vmatprep.subr.mxu0 0.0
    %126 = vmatpush1.msra.mxu0 %v96
    %127 = vmatprep.subr.mxu0 0.0
    %128 = vmatpush1.msra.mxu0 %v95
    %129 = vmatprep.subr.mxu0 0.0
    %130 = vmatpush1.msra.mxu0 %v94
    %131 = vmatprep.subr.mxu0 0.0
    %132 = vmatpush1.msra.mxu0 %v93
    %133 = vmatprep.subr.mxu0 0.0
    %134 = vmatpush1.msra.mxu0 %v92
    %135 = vmatprep.subr.mxu0 0.0
    %136 = vmatpush1.msra.mxu0 %v91
    %137 = vmatprep.subr.mxu0 0.0
    %138 = vmatpush1.msra.mxu0 %v90
    %139 = vmatprep.subr.mxu0 0.0
    %140 = vmatpush2.msra.mxu0 0.0
    %141 = vmatprep.subr.mxu0 0.0
    %142 = vmatpush2.msra.mxu0 0.0
    %143 = vmatprep.subr.mxu0 0.0
    %144 = vmatpush2.msra.mxu0 0.0
    %145 = vmatprep.subr.mxu0 0.0
    %146 = vmatpush2.msra.mxu0 0.0
    %147 = vmatprep.subr.mxu0 0.0
    %148 = vmatpush2.msra.mxu0 0.0
    %149 = vmatprep.subr.mxu0 0.0
    %150 = vmatpush2.msra.mxu0 0.0
    %151 = vmatprep.subr.mxu0 0.0
    %152 = vmatpush2.msra.mxu0 0.0
    %153 = vmatprep.subr.mxu0 0.0
    %154 = vmatpush2.msra.mxu0 0.0
    %155 = vmatprep.subr.mxu0 0.0
    %156 = vmatpush2.msra.mxu0 0.0
    %157 = vmatprep.subr.mxu0 0.0
    %158 = vmatpush2.msra.mxu0 0.0
    %159 = vmatprep.subr.mxu0 0.0
    %160 = vmatpush2.msra.mxu0 0.0
    %161 = vmatprep.subr.mxu0 0.0
    %162 = vmatpush2.msra.mxu0 0.0
    %163 = vmatprep.subr.mxu0 0.0
    %164 = vmatpush2.msra.mxu0 0.0
    %165 = vmatprep.subr.mxu0 0.0
    %166 = vmatpush2.msra.mxu0 0.0
    %167 = vmatprep.subr.mxu0 0.0
    %168 = vmatpush2.msra.mxu0 0.0
    %169 = vmatprep.subr.mxu0 0.0
    %170 = vmatpush2.msra.mxu0 0.0
    %171 = vmatprep.mubr.f32.mxu0 0.0
    %172 = vmatmul.mubr.f32.gmra.mxu0 %v89
    %v173 = vpop.f32.mrf.mxu0
    %v174 = vadd.f32 %v106, %v173
    %v175 = vpop.f32.mrf.mxu0
    %176 = vdwg.mxu0
    %v177 = vsel %vm65, %v174, 0.0
    %178 = vadd.xlane.f32.xlu0 %v177
    %v179 = vpop.xlane.xlu0 %178
    %v180 = vmul.f32 %v174, %v174
    %v181 = vsel %vm65, %v180, 0.0
    %182 = vadd.xlane.f32.xlu0 %v181
    %v183 = vpop.xlane.xlu0 %182
    %v184 = vmul.f32 %v179, 0.05
    %v185 = vmul.f32 %v183, 0.05
    %v186 = vmul.f32 %v184, %v184
    %v187 = vsub.f32 %v185, %v186
    %v188 = vmax.f32 %v187, 0.0
    %v189 = vsub.f32 %v174, %v184
    %v190 = vadd.f32 %v188, 1e-05
    %v191 = vrsqrt.pop %v190
    %v192 = vmul.f32 %v189, %v191
    %v193 = vld [vmem:[#allocation7 + $0xc] sm:$0x1]
    %v194 = vmul.f32 %v192, %v193
    %v195 = vld [vmem:[#allocation7 + $0xd] sm:$0x1]
    %v196 = vadd.f32 %v194, %v195
    %vm197 = vcmp.ge.f32.partialorder %v196, 0.0
    %v198 = vmul.f32 %v87, %v196
    %v199 = vsel %vm197, %v196, %v198
    %v200 = vld [vmem:[#allocation7 + $0x98] sm:$0xff]
    %v201 = vld [vmem:[#allocation7 + $0xa0] sm:$0xff]
    %v202 = vld [vmem:[#allocation7 + $0xa8] sm:$0xff]
    %v203 = vld [vmem:[#allocation7 + $0xb0] sm:$0xff]
    %v204 = vld [vmem:[#allocation7 + $0xb8] sm:$0xff]
    %v205 = vld [vmem:[#allocation7 + $0xc0] sm:$0xff]
    %v206 = vld [vmem:[#allocation7 + $0xc8] sm:$0xff]
    %v207 = vld [vmem:[#allocation7 + $0xd0] sm:$0xff]
    %v208 = vld [vmem:[#allocation7 + $0xd8] sm:$0xff]
    %v209 = vld [vmem:[#allocation7 + $0xe0] sm:$0xff]
    %v210 = vld [vmem:[#allocation7 + $0xe8] sm:$0xff]
    %v211 = vld [vmem:[#allocation7 + $0xf0] sm:$0xff]
    %v212 = vld [vmem:[#allocation7 + $0xf8] sm:$0xff]
    %v213 = vld [vmem:[#allocation7 + $0x100] sm:$0xff]
    %v214 = vld [vmem:[#allocation7 + $0x108] sm:$0xff]
    %v215 = vld [vmem:[#allocation7 + $0x110] sm:$0xff]
    %v216 = vld [vmem:[#allocation7 + $0xe] sm:$0x1]
    %217 = vmatprep.subr.mxu0 0.0
    %218 = vmatpush1.msra.mxu0 %v215
    %219 = vmatprep.subr.mxu0 0.0
    %220 = vmatpush1.msra.mxu0 %v214
    %221 = vmatprep.subr.mxu0 0.0
    %222 = vmatpush1.msra.mxu0 %v213
    %223 = vmatprep.subr.mxu0 0.0
    %224 = vmatpush1.msra.mxu0 %v212
    %225 = vmatprep.subr.mxu0 0.0
    %226 = vmatpush1.msra.mxu0 %v211
    %227 = vmatprep.subr.mxu0 0.0
    %228 = vmatpush1.msra.mxu0 %v210
    %229 = vmatprep.subr.mxu0 0.0
    %230 = vmatpush1.msra.mxu0 %v209
    %231 = vmatprep.subr.mxu0 0.0
    %232 = vmatpush1.msra.mxu0 %v208
    %233 = vmatprep.subr.mxu0 0.0
    %234 = vmatpush1.msra.mxu0 %v207
    %235 = vmatprep.subr.mxu0 0.0
    %236 = vmatpush1.msra.mxu0 %v206
    %237 = vmatprep.subr.mxu0 0.0
    %238 = vmatpush1.msra.mxu0 %v205
    %239 = vmatprep.subr.mxu0 0.0
    %240 = vmatpush1.msra.mxu0 %v204
    %241 = vmatprep.subr.mxu0 0.0
    %242 = vmatpush1.msra.mxu0 %v203
    %243 = vmatprep.subr.mxu0 0.0
    %244 = vmatpush1.msra.mxu0 %v202
    %245 = vmatprep.subr.mxu0 0.0
    %246 = vmatpush1.msra.mxu0 %v201
    %247 = vmatprep.subr.mxu0 0.0
    %248 = vmatpush1.msra.mxu0 %v200
    %249 = vmatprep.subr.mxu0 0.0
    %250 = vmatpush2.msra.mxu0 0.0
    %251 = vmatprep.subr.mxu0 0.0
    %252 = vmatpush2.msra.mxu0 0.0
    %253 = vmatprep.subr.mxu0 0.0
    %254 = vmatpush2.msra.mxu0 0.0
    %255 = vmatprep.subr.mxu0 0.0
    %256 = vmatpush2.msra.mxu0 0.0
    %257 = vmatprep.subr.mxu0 0.0
    %258 = vmatpush2.msra.mxu0 0.0
    %259 = vmatprep.subr.mxu0 0.0
    %260 = vmatpush2.msra.mxu0 0.0
    %261 = vmatprep.subr.mxu0 0.0
    %262 = vmatpush2.msra.mxu0 0.0
    %263 = vmatprep.subr.mxu0 0.0
    %264 = vmatpush2.msra.mxu0 0.0
    %265 = vmatprep.subr.mxu0 0.0
    %266 = vmatpush2.msra.mxu0 0.0
    %267 = vmatprep.subr.mxu0 0.0
    %268 = vmatpush2.msra.mxu0 0.0
    %269 = vmatprep.subr.mxu0 0.0
    %270 = vmatpush2.msra.mxu0 0.0
    %271 = vmatprep.subr.mxu0 0.0
    %272 = vmatpush2.msra.mxu0 0.0
    %273 = vmatprep.subr.mxu0 0.0
    %274 = vmatpush2.msra.mxu0 0.0
    %275 = vmatprep.subr.mxu0 0.0
    %276 = vmatpush2.msra.mxu0 0.0
    %277 = vmatprep.subr.mxu0 0.0
    %278 = vmatpush2.msra.mxu0 0.0
    %279 = vmatprep.subr.mxu0 0.0
    %280 = vmatpush2.msra.mxu0 0.0
    %281 = vmatprep.mubr.f32.mxu0 0.0
    %282 = vmatmul.mubr.f32.gmra.mxu0 %v199
    %v283 = vpop.f32.mrf.mxu0
    %v284 = vadd.f32 %v216, %v283
    %v285 = vpop.f32.mrf.mxu0
    %286 = vdwg.mxu0
    %v287 = vsel %vm65, %v284, 0.0
    %288 = vadd.xlane.f32.xlu0 %v287
    %v289 = vpop.xlane.xlu0 %288
    %v290 = vmul.f32 %v284, %v284
    %v291 = vsel %vm65, %v290, 0.0
    %292 = vadd.xlane.f32.xlu0 %v291
    %v293 = vpop.xlane.xlu0 %292
    %v294 = vmul.f32 %v289, 0.05
    %v295 = vmul.f32 %v293, 0.05
    %v296 = vmul.f32 %v294, %v294
    %v297 = vsub.f32 %v295, %v296
    %v298 = vmax.f32 %v297, 0.0
    %v299 = vsub.f32 %v284, %v294
    %v300 = vadd.f32 %v298, 1e-05
    %v301 = vrsqrt.pop %v300
    %v302 = vmul.f32 %v299, %v301
    %v303 = vld [vmem:[#allocation7 + $0xf] sm:$0x1]
    %v304 = vmul.f32 %v302, %v303
    %v305 = vld [vmem:[#allocation7 + $0x10] sm:$0x1]
    %v306 = vadd.f32 %v304, %v305
    %vm307 = vcmp.ge.f32.partialorder %v306, 0.0
    %v308 = vmul.f32 %v87, %v306
    %v309 = vsel %vm307, %v306, %v308
    %310 = vst [vmem:[#allocation8] sm:$0x1] %v309
    // Predicated region
    $region22: #{tpu_custom_call.1} parent=1 // pred_check
      _
    $region23: #{tpu_custom_call.1} parent=1 // pred_check_branch
      %312 = sbr.rel (0) target = $region25
    $region24: #{tpu_custom_call.1} parent=1 // pred_region
      %s314 = ssub.s32 16, 16
      %315 = vsyncadd [#allocation5], %s314
      %s317 = sshll.u32 [#allocation8], 4
      %s318 = int_to_ptr.vmem [resolvable:$true] %s317
      %320 = dma.vmem_to_hbm [thread:$0]  %s318, 16, %s3, [#allocation5]
    $region25: #{tpu_custom_call.1} parent=1 // pred_fallthru
      _
    // Predicated region
    $region26: #{tpu_custom_call.1} parent=1 // pred_check
      _
    $region27: #{tpu_custom_call.1} parent=1 // pred_check_branch
      %322 = sbr.rel (0) target = $region29
    $region28: #{tpu_custom_call.1} parent=1 // pred_region
      %323 = dma.done [#allocation5], 16
    $region29: #{tpu_custom_call.1} parent=1 // pred_fallthru
      _
    %324 = vsyncpa [#allocation4], 1
    %325 = vsyncpa [#allocation5], 1
    %326 = vsyncpa [#allocation6], 1

</llo_original>
